<compile_context>
chip_gen: v5e
topology: v5e:2x2
jax: 0.10.0
libtpu: 0.0.40
codegen_flags: <defaults>
</compile_context>

<pallas_src>
import jax
import jax.numpy as jnp
from jax.experimental import pallas as pl
from jax.experimental.pallas import tpu as pltpu


def _first_p_init_kernel(idx_ref, diag_ref, a_ref, o_ref):
    idx = idx_ref[...]                          # (3, TB) int32
    diag = diag_ref[...]                        # (N, 1) float32
    A = a_ref[...]                              # (N, N) float32
    N = A.shape[0]
    TB = idx.shape[1]

    i = idx[0:1, :]                             # (1, TB)
    j = idx[1:2, :]
    k = idx[2:3, :]

    row = jax.lax.broadcasted_iota(jnp.int32, (N, TB), 0)    # (N, TB)
    oh_i = (row == i).astype(jnp.float32)
    oh_j = (row == j).astype(jnp.float32)
    oh_k = (row == k).astype(jnp.float32)

    # Single fused MXU gather: c[m, t] = A[m, j_t] + A[m, k_t]
    c = jnp.dot(A, oh_j + oh_k, preferred_element_type=jnp.float32)   # (N, TB)

    # Masked sublane reduce:
    #   row i contributes A[i,j] + A[i,k]
    #   row j contributes (A[j,j] + A[j,k]) - A[j,j] = A[j,k]
    # Degenerate i==j / j==k / i==k cases stay exact (adds, not selects).
    s = c * (oh_i + oh_j) - diag * oh_j                               # (N, TB)
    val = jnp.sum(s, axis=0, keepdims=True) * (1.0 / 3.0)             # (1, TB)
    o_ref[...] = val.reshape(o_ref.shape)


def first_p_init(triangles_indexes, A_s, triangles):
    """Pallas implementation of FirstPInitLayer.forward."""
    del triangles  # reference only uses its leading dim; identical to T here
    T = triangles_indexes.shape[0]
    N = A_s.shape[0]
    if T == 0:
        return jnp.zeros((0,), jnp.float32)

    # Generation-aware VMEM budget (per TensorCore).
    try:
        vmem_cap = int(pltpu.get_tpu_info().vmem_capacity_bytes)
    except Exception:
        vmem_cap = 64 << 20            # conservative (v7x) fallback
    budget = (vmem_cap * 4) // 5       # ~50 MiB on v7x, ~100 MiB on v5e/v6e

    def vmem_est(tb):
        fixed = 8 * N * N              # A, f32, double-buffered
        fixed += 2 * 4 * N * 128       # diag (N,1) lane-padded, double-buffered
        per_blk = 2 * (4 * 8 * tb + 4 * tb)   # idx (3->8 sublanes) + out blocks
        temps = 32 * N * tb            # ~8 live (N, TB) f32 intermediates
        return fixed + per_blk + temps + (2 << 20)   # + compiler scratch slack

    # Triangle block size: multiple of 128 (lane-dense output).  Grow up to
    # 2048 when VMEM allows, but keep G >= 2 when T permits so the "parallel"
    # axis feeds both v7x TensorCores.
    TB = 2048
    while TB > 128 and vmem_est(TB) > budget:
        TB //= 2
    max_tb_for_T = 128 * pl.cdiv(T, 128)
    TB = min(TB, max_tb_for_T)
    if max_tb_for_T >= 256:
        TB = min(TB, 128 * pl.cdiv(pl.cdiv(T, 128), 2))
    TB = max(TB, 128)

    T_pad = TB * pl.cdiv(T, TB)
    G = T_pad // TB

    idx_t = jnp.transpose(jnp.asarray(triangles_indexes, jnp.int32))  # (3, T)
    if T_pad != T:
        idx_t = jnp.pad(idx_t, ((0, 0), (0, T_pad - T)))              # pad with 0s
    A = jnp.asarray(A_s, jnp.float32)
    diag = jnp.diagonal(A).reshape(N, 1)                              # (N, 1)

    est = vmem_est(TB)
    vmem_limit = min(int(est * 1.2), budget) if est > (16 << 20) else None

    cost = pl.CostEstimate(
        flops=2 * N * N * T_pad + 8 * N * T_pad,
        transcendentals=0,
        bytes_accessed=4 * N * N + 4 * N + 16 * T_pad,
    )

    out = pl.pallas_call(
        _first_p_init_kernel,
        out_shape=jax.ShapeDtypeStruct((G, 1, TB), jnp.float32),
        grid_spec=pltpu.PrefetchScalarGridSpec(
            num_scalar_prefetch=0,
            grid=(G,),
            in_specs=[
                pl.BlockSpec((3, TB), lambda t: (0, t)),   # indices, lane-major
                pl.BlockSpec((N, 1), lambda t: (0, 0)),    # diag(A), resident
                pl.BlockSpec((N, N), lambda t: (0, 0)),    # A_s, VMEM-resident
            ],
            out_specs=pl.BlockSpec((1, 1, TB), lambda t: (t, 0, 0)),
        ),
        compiler_params=pltpu.CompilerParams(
            dimension_semantics=("parallel",),
            vmem_limit_bytes=vmem_limit,
        ),
        cost_estimate=cost,
    )(idx_t, diag, A)
    return out.reshape(T_pad)[:T]


if __name__ == "__main__":
    key = jax.random.PRNGKey(0)

    def ref(tri_idx, A):
        i, j, k = tri_idx[:, 0], tri_idx[:, 1], tri_idx[:, 2]
        return (A[i, j] + A[i, k] + A[j, k]) / 3.0

    # Small shapes consistent with the module's forward.
    k_idx, k_as = jax.random.split(key)
    N, T = 16, 8
    triangles_indexes = jax.random.randint(k_idx, (T, 3), 0, N, dtype=jnp.int32)
    A_s = jax.random.normal(k_as, (N, N), dtype=jnp.float32)
    triangles = jnp.zeros((T, 3), dtype=jnp.float32)

    p_init = jax.block_until_ready(first_p_init(triangles_indexes, A_s, triangles))
    assert p_init.shape == (T,)
    assert jnp.allclose(p_init, ref(triangles_indexes, A_s), atol=1e-6, rtol=1e-6)

    # Second check exercising the tiled (multi-block + padded) path, including
    # degenerate triangles (repeated vertices).
    k_idx2, k_as2 = jax.random.split(k_as)
    N2, T2 = 48, 1200
    tri2 = jax.random.randint(k_idx2, (T2, 3), 0, N2, dtype=jnp.int32)
    tri2 = tri2.at[7, 1].set(tri2[7, 0])     # i == j
    tri2 = tri2.at[11, 2].set(tri2[11, 1])   # j == k
    tri2 = tri2.at[13].set(tri2[13, 0])      # i == j == k
    A2 = jax.random.normal(k_as2, (N2, N2), dtype=jnp.float32)
    p2 = jax.block_until_ready(
        first_p_init(tri2, A2, jnp.zeros((T2, 3), dtype=jnp.float32)))
    assert p2.shape == (T2,)
    assert jnp.allclose(p2, ref(tri2, A2), atol=1e-6, rtol=1e-6)

    print("KERNEL_OK")
</pallas_src>

<mosaic_0001>
module attributes {stable_mosaic.version = 11 : i64} {
  func.func @_first_p_init_kernel(%arg0: i32, %arg1: memref<3x128xi32, #tpu.memory_space<vmem>>, %arg2: memref<16x1xf32, #tpu.memory_space<vmem>>, %arg3: memref<16x16xf32, #tpu.memory_space<vmem>>, %arg4: memref<1x1x128xf32, #tpu.memory_space<vmem>>) attributes {dimension_semantics = [#tpu.dimension_semantics<parallel>], iteration_bounds = array<i64: 1>, scalar_prefetch = 0 : i64, scratch_operands = 0 : i64, tpu.core_type = #tpu.core_type<tc>, window_params = [{transform_indices = @transform_0, window_bounds = array<i64: 3, 128>}, {pipeline_mode = #tpu.pipeline_mode<synchronous>, transform_indices = @transform_1, window_bounds = array<i64: 16, 1>}, {pipeline_mode = #tpu.pipeline_mode<synchronous>, transform_indices = @transform_2, window_bounds = array<i64: 16, 16>}, {transform_indices = @transform_3, window_bounds = array<i64: 1, 1, 128>}]} {
    %c0 = arith.constant 0 : index
    %c0_0 = arith.constant 0 : index
    %0 = vector.load %arg1[%c0, %c0_0] : memref<3x128xi32, #tpu.memory_space<vmem>>, vector<3x128xi32>
    %c0_1 = arith.constant 0 : index
    %c0_2 = arith.constant 0 : index
    %1 = vector.load %arg2[%c0_1, %c0_2] : memref<16x1xf32, #tpu.memory_space<vmem>>, vector<16x1xf32>
    %c0_3 = arith.constant 0 : index
    %c0_4 = arith.constant 0 : index
    %2 = vector.load %arg3[%c0_3, %c0_4] : memref<16x16xf32, #tpu.memory_space<vmem>>, vector<16x16xf32>
    %3 = vector.extract_strided_slice %0 {offsets = [0, 0], sizes = [1, 128], strides = [1, 1]} : vector<3x128xi32> to vector<1x128xi32>
    %4 = vector.extract_strided_slice %0 {offsets = [1, 0], sizes = [1, 128], strides = [1, 1]} : vector<3x128xi32> to vector<1x128xi32>
    %5 = vector.extract_strided_slice %0 {offsets = [2, 0], sizes = [1, 128], strides = [1, 1]} : vector<3x128xi32> to vector<1x128xi32>
    %6 = tpu.iota {dimensions = array<i32: 0>} : vector<16x128xi32>
    %7 = vector.broadcast %3 : vector<1x128xi32> to vector<16x128xi32>
    %8 = arith.cmpi eq, %6, %7 : vector<16x128xi32>
    %9 = arith.extui %8 : vector<16x128xi1> to vector<16x128xi32>
    %10 = arith.sitofp %9 : vector<16x128xi32> to vector<16x128xf32>
    %11 = vector.broadcast %4 : vector<1x128xi32> to vector<16x128xi32>
    %12 = arith.cmpi eq, %6, %11 : vector<16x128xi32>
    %13 = arith.extui %12 : vector<16x128xi1> to vector<16x128xi32>
    %14 = arith.sitofp %13 : vector<16x128xi32> to vector<16x128xf32>
    %15 = vector.broadcast %5 : vector<1x128xi32> to vector<16x128xi32>
    %16 = arith.cmpi eq, %6, %15 : vector<16x128xi32>
    %17 = arith.extui %16 : vector<16x128xi1> to vector<16x128xi32>
    %18 = arith.sitofp %17 : vector<16x128xi32> to vector<16x128xf32>
    %19 = arith.addf %14, %18 : vector<16x128xf32>
    %cst = arith.constant dense<0.000000e+00> : vector<16x128xf32>
    %20 = tpu.matmul %2, %19, %cst {dimension_numbers = #tpu.dot_dimension_numbers<[1], [0], [0], [1], [0, 0, 1, 1], [], []>} : vector<16x16xf32>, vector<16x128xf32>, vector<16x128xf32> -> vector<16x128xf32>
    %21 = arith.addf %10, %14 : vector<16x128xf32>
    %22 = arith.mulf %20, %21 : vector<16x128xf32>
    %23 = vector.broadcast %1 : vector<16x1xf32> to vector<16x128xf32>
    %24 = arith.mulf %23, %14 : vector<16x128xf32>
    %25 = arith.subf %22, %24 : vector<16x128xf32>
    %cst_5 = arith.constant dense<0.000000e+00> : vector<128xf32>
    %26 = vector.multi_reduction <add>, %25, %cst_5 [0] : vector<16x128xf32> to vector<128xf32>
    %27 = vector.shape_cast %26 : vector<128xf32> to vector<1x128xf32>
    %cst_6 = arith.constant 0.333333343 : f32
    %28 = vector.broadcast %cst_6 : f32 to vector<1x128xf32>
    %29 = arith.mulf %27, %28 : vector<1x128xf32>
    %30 = vector.shape_cast %29 : vector<1x128xf32> to vector<1x1x128xf32>
    %c0_7 = arith.constant 0 : index
    %c0_8 = arith.constant 0 : index
    %c0_9 = arith.constant 0 : index
    %31 = vector.load %arg4[%c0_7, %c0_8, %c0_9] : memref<1x1x128xf32, #tpu.memory_space<vmem>>, vector<1x1x128xf32>
    tpu.vector_store %arg4[%c0_7, %c0_8, %c0_9], %30 {strides = array<i32>} : memref<1x1x128xf32, #tpu.memory_space<vmem>>, vector<1x1x128xf32>,
    return
  }
  func.func @transform_0(%arg0: i32) -> (i32, i32) {
    %c0_i32 = arith.constant 0 : i32
    %c0_i32_0 = arith.constant 0 : i32
    return %c0_i32, %arg0 : i32, i32
  }
  func.func @transform_1(%arg0: i32) -> (i32, i32) {
    %c0_i32 = arith.constant 0 : i32
    %c0_i32_0 = arith.constant 0 : i32
    %c0_i32_1 = arith.constant 0 : i32
    return %c0_i32, %c0_i32_0 : i32, i32
  }
  func.func @transform_2(%arg0: i32) -> (i32, i32) {
    %c0_i32 = arith.constant 0 : i32
    %c0_i32_0 = arith.constant 0 : i32
    %c0_i32_1 = arith.constant 0 : i32
    return %c0_i32, %c0_i32_0 : i32, i32
  }
  func.func @transform_3(%arg0: i32) -> (i32, i32, i32) {
    %c0_i32 = arith.constant 0 : i32
    %c0_i32_0 = arith.constant 0 : i32
    %c0_i32_1 = arith.constant 0 : i32
    return %arg0, %c0_i32, %c0_i32_0 : i32, i32, i32
  }
}

</mosaic_0001>

<llo_original>
// kernel: tpu_custom_call.1
$region0: #{tpu_custom_call.1}
  #allocation0 [shape = 'u32[]', space=smem, size = 0x4, offset = 0x4, fixed_abs, tag = 'smem constant byte address 0x4 - core index']
  #allocation1 [shape = 'u32[72,128]{1,0:T(1,128)}', space=vmem, size = 0x9000, scoped, tag = 'internal scratch']
  %s0 = inlined_call_operand.hbm [shape: s32[3,128], index: 0, kind: input, shape index: {}]
  %s1 = inlined_call_operand.vmem [shape: f32[16,1], index: 1, kind: input, shape index: {}]
  %s2 = inlined_call_operand.vmem [shape: f32[16,16], index: 2, kind: input, shape index: {}]
  %s3 = inlined_call_operand.hbm [shape: f32[1,1,128], index: 3, kind: output, shape index: {}]
  %s4 = sld [smem:[#allocation0]]
  $region26: #{tpu_custom_call.1} parent=0
    _
  %s6 = ssub.s32 1, %s4
  %s7 = scalar_select 0, %s6, %s4
  $region1: #{tpu_custom_call.1} parent=0
    #allocation2 [shape = 'u8[2048]{0}', space=vmem, size = 0x800, scoped, tag = 'input window, operand 0, single buffered']
    #allocation3 [shape = 's32[1]{0}', space=sflag, size = 0x4, scoped, tag = 'scoped memory for tpu_custom_call.1']
    #allocation4 [shape = 's32[1]{0}', space=sflag, size = 0x4, scoped, tag = 'scoped memory for tpu_custom_call.1']
    #allocation5 [shape = 'u8[512]{0}', space=vmem, size = 0x400, scoped, tag = 'output window, operand 0, single buffered']
    %8 = vsyncpa [#allocation3], 0
    %9 = vsyncpa [#allocation4], 0
    // Predicated region
    $region2: #{tpu_custom_call.1} parent=1 // pred_check
      _
    $region3: #{tpu_custom_call.1} parent=1 // pred_check_branch
      %11 = sbr.rel (0) target = $region5
    $region4: #{tpu_custom_call.1} parent=1 // pred_region
      %13 = vsyncadd [#allocation3], 0
      %s15 = sshll.u32 %s0, 4
      %s16 = int_to_ptr.hbm [resolvable:$true] %s15
      %s17 = sshll.u32 [#allocation2], 4
      %s18 = int_to_ptr.vmem [resolvable:$true] %s17
      %20 = dma.hbm_to_vmem [thread:$0]  %s16, 64, %s18, [#allocation3]
    $region5: #{tpu_custom_call.1} parent=1 // pred_fallthru
      _
    // Predicated region
    $region6: #{tpu_custom_call.1} parent=1 // pred_check
      _
    $region7: #{tpu_custom_call.1} parent=1 // pred_check_branch
      %22 = sbr.rel (0) target = $region9
    $region8: #{tpu_custom_call.1} parent=1 // pred_region
      _
    $region9: #{tpu_custom_call.1} parent=1 // pred_fallthru
      _
    // Predicated region
    $region10: #{tpu_custom_call.1} parent=1 // pred_check
      _
    $region11: #{tpu_custom_call.1} parent=1 // pred_check_branch
      %24 = sbr.rel (0) target = $region13
    $region12: #{tpu_custom_call.1} parent=1 // pred_region
      _
    $region13: #{tpu_custom_call.1} parent=1 // pred_fallthru
      _
    // Predicated region
    $region14: #{tpu_custom_call.1} parent=1 // pred_check
      _
    $region15: #{tpu_custom_call.1} parent=1 // pred_check_branch
      %26 = sbr.rel (0) target = $region17
    $region16: #{tpu_custom_call.1} parent=1 // pred_region
      %28 = dma.done [#allocation3], 64
    $region17: #{tpu_custom_call.1} parent=1 // pred_fallthru
      _
    %v29 = vld [vmem:[#allocation2] sm:$0x7]
    %v30 = vld [vmem:[%s1] sm:$0xff]
    %v31 = vld [vmem:[%s1 + $0x8] sm:$0xff]
    %v32 = vld [vmem:[%s2] sm:$0xff]
    %v33 = vld [vmem:[%s2 + $0x8] sm:$0xff]
    %v34 = vlaneseq
    %v35 = vshrl.u32 %v34, 7
    %v36 = vadd.s32 %v35, 8
    %v37 = vperm.slane %v29, 0
    %vm38 = vcmp.eq.s32.totalorder %v35, %v37
    %vm39 = vcmp.eq.s32.totalorder %v36, %v37
    %v40 = vsel %vm38, 1, 0
    %v41 = vsel %vm39, 1, 0
    %v42 = vcvt.s32.f32 %v40
    %v43 = vcvt.s32.f32 %v41
    %v44 = vperm.slane %v29, 1
    %vm45 = vcmp.eq.s32.totalorder %v35, %v44
    %vm46 = vcmp.eq.s32.totalorder %v36, %v44
    %v47 = vsel %vm45, 1, 0
    %v48 = vsel %vm46, 1, 0
    %v49 = vcvt.s32.f32 %v47
    %v50 = vcvt.s32.f32 %v48
    %v51 = vperm.slane %v29, 2
    %vm52 = vcmp.eq.s32.totalorder %v35, %v51
    %vm53 = vcmp.eq.s32.totalorder %v36, %v51
    %v54 = vsel %vm52, 1, 0
    %v55 = vsel %vm53, 1, 0
    %v56 = vcvt.s32.f32 %v54
    %v57 = vcvt.s32.f32 %v55
    %v58 = vadd.f32 %v49, %v56
    %v59 = vadd.f32 %v50, %v57
    %vm60 = vcmask 130048
    %v62 = vsel %vm60, %v32, 0
    %v65 = vsel %vm60, %v33, 0
    %67 = vmatpush.msra.mxu0 0.0
    %68 = vmatpush.msra.mxu0 0.0
    %69 = vmatpush.msra.mxu0 0.0
    %70 = vmatpush.msra.mxu0 0.0
    %71 = vmatpush.msra.mxu0 0.0
    %72 = vmatpush.msra.mxu0 0.0
    %73 = vmatpush.msra.mxu0 0.0
    %74 = vmatpush.msra.mxu0 0.0
    %75 = vmatpush.msra.mxu0 0.0
    %76 = vmatpush.msra.mxu0 0.0
    %77 = vmatpush.msra.mxu0 0.0
    %78 = vmatpush.msra.mxu0 0.0
    %79 = vmatpush.msra.mxu0 0.0
    %80 = vmatpush.msra.mxu0 0.0
    %81 = vmatpush.msra.mxu0 %v59
    %82 = vmatpush.msra.mxu0 %v58
    %83 = vmatmul.f32.gmra.mxu0 %v62
    %v84 = vpop.f32.mrf.mxu0
    %v85 = vadd.f32 0.0, %v84
    %86 = vmatmul.f32.gmra.mxu0 %v65
    %v87 = vpop.f32.mrf.mxu0
    %v88 = vadd.f32 0.0, %v87
    %89 = vdwg.mxu0
    %v90 = vadd.f32 %v42, %v49
    %v91 = vadd.f32 %v43, %v50
    %v92 = vmul.f32 %v85, %v90
    %v93 = vmul.f32 %v88, %v91
    %95 = vset.pattern.permute.xlu0 0
    %96 = vperm.xlu0 %95, %v30
    %v97 = vpop.permute.xlu0 %96
    %100 = vset.pattern.permute.xlu0 0
    %101 = vperm.xlu0 %100, %v31
    %v102 = vpop.permute.xlu0 %101
    %v104 = vmul.f32 %v97, %v49
    %v105 = vmul.f32 %v102, %v50
    %v106 = vsub.f32 %v92, %v104
    %v107 = vsub.f32 %v93, %v105
    %v108 = vadd.f32 %v106, %v107
    %v109 = vrot.slane %v108, 4
    %v110 = vadd.f32 %v108, %v109
    %v111 = vrot.slane %v110, 2
    %v112 = vadd.f32 %v110, %v111
    %v113 = vrot.slane %v112, 1
    %v114 = vadd.f32 %v112, %v113
    %v115 = vmul.f32 %v114, 0.33333334
    %116 = vst [vmem:[#allocation5] sm:$0x1] %v115
    // Predicated region
    $region18: #{tpu_custom_call.1} parent=1 // pred_check
      _
    $region19: #{tpu_custom_call.1} parent=1 // pred_check_branch
      %118 = sbr.rel (0) target = $region21
    $region20: #{tpu_custom_call.1} parent=1 // pred_region
      %120 = vsyncadd [#allocation4], 0
      %s122 = sshll.u32 [#allocation5], 4
      %s123 = int_to_ptr.vmem [resolvable:$true] %s122
      %s124 = sshll.u32 %s3, 4
      %s125 = int_to_ptr.hbm [resolvable:$true] %s124
      %127 = dma.vmem_to_hbm [thread:$0]  %s123, 16, %s125, [#allocation4]
    $region21: #{tpu_custom_call.1} parent=1 // pred_fallthru
      _
    // Predicated region
    $region22: #{tpu_custom_call.1} parent=1 // pred_check
      _
    $region23: #{tpu_custom_call.1} parent=1 // pred_check_branch
      %129 = sbr.rel (0) target = $region25
    $region24: #{tpu_custom_call.1} parent=1 // pred_region
      %131 = dma.done [#allocation4], 16
    $region25: #{tpu_custom_call.1} parent=1 // pred_fallthru
      _
    %132 = vsyncpa [#allocation3], 1
    %133 = vsyncpa [#allocation4], 1

</llo_original>
